<compile_context>
chip_gen: v7x
topology: tpu7x:2x2x1
jax: 0.10.0
libtpu: 0.0.40
codegen_flags: <defaults>
</compile_context>

<pallas_src>
import math

import jax
import jax.numpy as jnp
from jax import lax
from jax.experimental import pallas as pl
from jax.experimental.pallas import tpu as pltpu


NEG_INF = -1e30                 # finite "minus infinity": exp underflows to 0, never NaN
ROW_TILE = 256                  # projection row tile (MXU M; use 128 on v5e)
SEQ_TILE = 128                  # flash q/kv tile (lane-aligned; v5e MXU friendly)
VMEM_LIMIT = 32 * 1024 * 1024   # explicit scoped-VMEM budget (headroom on v7x 64 MiB)


# ------------------------------ linear (matmul) kernel -------------------------

def _linear_kernel(x_ref, w_ref, b_ref, o_ref):
    # (rt, K) @ (K, N) on the MXU, f32 accumulation, f32 bias add.
    acc = jnp.dot(x_ref[...], w_ref[...], preferred_element_type=jnp.float32)
    o_ref[...] = (acc + b_ref[...]).astype(o_ref.dtype)


def _linear(x2d, w, b, out_dtype, row_tile=ROW_TILE):
    """x2d: (R, K) bf16, w: (K, N) bf16, b: (1, N) f32 -> (R, N) out_dtype."""
    R, K = x2d.shape
    N = w.shape[1]
    rt = min(row_tile, R)
    Rp = ((R + rt - 1) // rt) * rt
    if Rp != R:
        x2d = jnp.pad(x2d, ((0, Rp - R), (0, 0)))
    out = pl.pallas_call(
        _linear_kernel,
        grid=(Rp // rt,),
        in_specs=[
            pl.BlockSpec((rt, K), lambda i: (i, 0)),
            # Constant-index weight/bias: DMA'd once and kept resident in VMEM.
            pl.BlockSpec((K, N), lambda i: (0, 0)),
            pl.BlockSpec((1, N), lambda i: (0, 0)),
        ],
        out_specs=pl.BlockSpec((rt, N), lambda i: (i, 0)),
        out_shape=jax.ShapeDtypeStruct((Rp, N), out_dtype),
        compiler_params=pltpu.CompilerParams(
            dimension_semantics=("parallel",),
            vmem_limit_bytes=VMEM_LIMIT),
    )(x2d, w, b)
    return out if Rp == R else out[:R]


# ------------------------------ flash attention kernel -------------------------

def _flash_attn_kernel(q_ref, k_ref, v_ref, o_ref, m_sc, l_sc, acc_sc):
    qi = pl.program_id(1)
    ki = pl.program_id(2)
    tq, _ = q_ref.shape
    tk, _ = k_ref.shape

    @pl.when(ki == 0)
    def _init():
        m_sc[...] = jnp.full_like(m_sc, NEG_INF)
        l_sc[...] = jnp.zeros_like(l_sc)
        acc_sc[...] = jnp.zeros_like(acc_sc)

    q_start = qi * tq
    k_start = ki * tk

    def update(s):
        # Online-softmax update with UNNORMALIZED probabilities; the divide by
        # l is deferred to the final (tq, D) output.
        m_prev = m_sc[...]
        m_new = jnp.maximum(m_prev, jnp.max(s, axis=-1, keepdims=True))
        alpha = jnp.exp(m_prev - m_new)
        p = jnp.exp(s - m_new)                                      # (tq, tk) f32
        l_sc[...] = alpha * l_sc[...] + jnp.sum(p, axis=-1, keepdims=True)
        acc_sc[...] = alpha * acc_sc[...] + jnp.dot(
            p.astype(v_ref.dtype), v_ref[...],
            preferred_element_type=jnp.float32)
        m_sc[...] = m_new

    # Skip KV tiles that lie entirely above the causal diagonal.
    @pl.when(k_start <= q_start + (tq - 1))
    def _compute():
        # 1/sqrt(D) already folded into q at weight prep -> plain dot here.
        s = jnp.einsum('td,sd->ts', q_ref[...], k_ref[...],
                       preferred_element_type=jnp.float32)          # (tq, tk)

        @pl.when(k_start + (tk - 1) <= q_start)      # fully visible block: no mask
        def _():
            update(s)

        @pl.when(k_start + (tk - 1) > q_start)       # diagonal block: apply mask
        def _():
            row = lax.broadcasted_iota(jnp.int32, (tq, tk), 0) + q_start
            col = lax.broadcasted_iota(jnp.int32, (tq, tk), 1) + k_start
            update(jnp.where(row >= col, s, NEG_INF))

    @pl.when(ki == pl.num_programs(2) - 1)
    def _finalize():
        # Deferred normalization: one (tq, D) scale instead of a (tq, tk) one;
        # reciprocal runs on the EUP slot.
        o_ref[...] = (acc_sc[...] *
                      pl.reciprocal(l_sc[...], approx=True)).astype(o_ref.dtype)


def _flash_attention(q, k, v, seq_tile=SEQ_TILE):
    """q/k/v: (B*H, T, D) bf16, scale pre-folded into q. Returns (B*H, T, D) bf16."""
    BH, T, D = q.shape
    t = min(seq_tile, T)
    assert T % t == 0, "pad the sequence length to a multiple of SEQ_TILE"
    nt = T // t

    q_spec = pl.BlockSpec((None, t, D), lambda bh, qi, ki: (bh, qi, 0))
    kv_spec = pl.BlockSpec((None, t, D), lambda bh, qi, ki: (bh, ki, 0))

    return pl.pallas_call(
        _flash_attn_kernel,
        grid=(BH, nt, nt),
        in_specs=[q_spec, kv_spec, kv_spec],
        out_specs=q_spec,
        out_shape=jax.ShapeDtypeStruct((BH, T, D), jnp.bfloat16),
        scratch_shapes=[
            pltpu.VMEM((t, 1), jnp.float32),   # running max
            pltpu.VMEM((t, 1), jnp.float32),   # running sum
            pltpu.VMEM((t, D), jnp.float32),   # output accumulator
        ],
        compiler_params=pltpu.CompilerParams(
            dimension_semantics=("parallel", "parallel", "arbitrary"),
            vmem_limit_bytes=VMEM_LIMIT),
    )(q, k, v)


# --------------------------------- wrapper --------------------------------------

def prepare_weights(w_attn, b_attn, w_proj, b_proj, n_head):
    """One-time weight preparation: fold 1/sqrt(D) into the q projection columns
    and cast matmul weights to bf16. Weights are (in, out) = torch weight.T."""
    C = w_attn.shape[0]
    D = C // n_head
    scale = 1.0 / math.sqrt(D)
    col_scale = jnp.concatenate(
        [jnp.full((C,), scale, jnp.float32), jnp.ones((2 * C,), jnp.float32)])
    w_qkv = (w_attn.astype(jnp.float32) * col_scale[None, :]).astype(jnp.bfloat16)
    b_qkv = (b_attn.astype(jnp.float32) * col_scale[None, :]).astype(jnp.float32)
    return w_qkv, b_qkv, w_proj.astype(jnp.bfloat16), b_proj.astype(jnp.float32)


def attention_forward(x, w_qkv, b_qkv, w_proj, b_proj, n_head):
    """x: (B, T, C) f32; weights from prepare_weights. Returns (B, T, C) f32."""
    B, T, C = x.shape
    H = n_head
    D = C // H

    # bf16 activation I/O (halves HBM<->VMEM bytes vs. DMA'ing f32).
    x2d = x.reshape(B * T, C).astype(jnp.bfloat16)

    # Fused QKV projection over lane/sublane-dense (B*T, 3C) row tiles.
    qkv = _linear(x2d, w_qkv, b_qkv, out_dtype=jnp.bfloat16)          # (B*T, 3C)

    # Head-major relayout (wrapper-side layout plumbing, done in bf16) so the
    # attention kernel grids over (batch*head, q-tile, kv-tile) with no
    # in-kernel transposes.
    qkv = qkv.reshape(B, T, 3, H, D)

    def heads(i):
        return qkv[:, :, i].transpose(0, 2, 1, 3).reshape(B * H, T, D)

    q, k, v = heads(0), heads(1), heads(2)

    y = _flash_attention(q, k, v)                                      # (B*H, T, D)

    # Merge heads back to (B*T, C) and apply the output projection.
    y2d = y.reshape(B, H, T, D).transpose(0, 2, 1, 3).reshape(B * T, C)
    out = _linear(y2d, w_proj, b_proj, out_dtype=jnp.float32)          # (B*T, C)
    return out.reshape(B, T, C)


# --------------------------- pure-JAX f32 reference ------------------------------

def ref_attention(x, w_attn, b_attn, w_proj, b_proj, n_head):
    B, T, C = x.shape
    D = C // n_head
    qkv = x @ w_attn + b_attn
    q, k, v = jnp.split(qkv, 3, axis=-1)

    def split_heads(z):
        return z.reshape(B, T, n_head, D).transpose(0, 2, 1, 3)

    q, k, v = split_heads(q), split_heads(k), split_heads(v)
    att = (q @ k.transpose(0, 1, 3, 2)) * (1.0 / math.sqrt(D))
    mask = jnp.tril(jnp.ones((T, T), bool))
    att = jnp.where(mask[None, None], att, -jnp.inf)
    att = jax.nn.softmax(att, axis=-1)
    y = (att @ v).transpose(0, 2, 1, 3).reshape(B, T, C)
    return y @ w_proj + b_proj


# ----------------------------------- main ----------------------------------------

if __name__ == "__main__":
    # cfg: n_embd=32, n_head=4, block_size=16
    C, H, BLOCK_SIZE = 32, 4, 16
    B, T = 2, 8

    key = jax.random.PRNGKey(0)
    k_x, k_wa, k_ba, k_wp, k_bp = jax.random.split(key, 5)

    x = jax.random.normal(k_x, (B, T, C), jnp.float32)
    w_attn = jax.random.normal(k_wa, (C, 3 * C), jnp.float32) * 0.02
    b_attn = jax.random.normal(k_ba, (1, 3 * C), jnp.float32) * 0.01
    w_proj = jax.random.normal(k_wp, (C, C), jnp.float32) * 0.02
    b_proj = jax.random.normal(k_bp, (1, C), jnp.float32) * 0.01

    # One-time weight prep (scale folding + bf16 cast), then the forward pass.
    w_qkv, b_qkv, w_p, b_p = prepare_weights(w_attn, b_attn, w_proj, b_proj, H)
    out = attention_forward(x, w_qkv, b_qkv, w_p, b_p, H)
    out = jax.block_until_ready(out)

    ref = ref_attention(x, w_attn, b_attn, w_proj, b_proj, H)
    assert out.shape == (B, T, C)
    assert jnp.allclose(out, ref, atol=1e-2, rtol=1e-2), (
        float(jnp.max(jnp.abs(out - ref))))

    print("KERNEL_OK")
</pallas_src>

<mosaic_0001>
module attributes {stable_mosaic.version = 11 : i64} {
  func.func @_linear_kernel(%arg0: i32, %arg1: memref<16x32xbf16, #tpu.memory_space<vmem>>, %arg2: memref<32x96xbf16, #tpu.memory_space<vmem>>, %arg3: memref<1x96xf32, #tpu.memory_space<vmem>>, %arg4: memref<16x96xbf16, #tpu.memory_space<vmem>>) attributes {dimension_semantics = [#tpu.dimension_semantics<parallel>], iteration_bounds = array<i64: 1>, scalar_prefetch = 0 : i64, scratch_operands = 0 : i64, tpu.core_type = #tpu.core_type<tc>, window_params = [{transform_indices = @transform_0, window_bounds = array<i64: 16, 32>}, {pipeline_mode = #tpu.pipeline_mode<synchronous>, transform_indices = @transform_1, window_bounds = array<i64: 32, 96>}, {pipeline_mode = #tpu.pipeline_mode<synchronous>, transform_indices = @transform_2, window_bounds = array<i64: 1, 96>}, {transform_indices = @transform_3, window_bounds = array<i64: 16, 96>}]} {
    %c0 = arith.constant 0 : index
    %c0_0 = arith.constant 0 : index
    %0 = vector.load %arg1[%c0, %c0_0] : memref<16x32xbf16, #tpu.memory_space<vmem>>, vector<16x32xbf16>
    %c0_1 = arith.constant 0 : index
    %c0_2 = arith.constant 0 : index
    %1 = vector.load %arg2[%c0_1, %c0_2] : memref<32x96xbf16, #tpu.memory_space<vmem>>, vector<32x96xbf16>
    %cst = arith.constant dense<0.000000e+00> : vector<16x96xf32>
    %2 = tpu.matmul %0, %1, %cst {dimension_numbers = #tpu.dot_dimension_numbers<[1], [0], [0], [1], [0, 0, 1, 1], [], []>} : vector<16x32xbf16>, vector<32x96xbf16>, vector<16x96xf32> -> vector<16x96xf32>
    %c0_3 = arith.constant 0 : index
    %c0_4 = arith.constant 0 : index
    %3 = vector.load %arg3[%c0_3, %c0_4] : memref<1x96xf32, #tpu.memory_space<vmem>>, vector<1x96xf32>
    %4 = vector.broadcast %3 : vector<1x96xf32> to vector<16x96xf32>
    %5 = arith.addf %2, %4 : vector<16x96xf32>
    %6 = arith.truncf %5 : vector<16x96xf32> to vector<16x96xbf16>
    %c0_5 = arith.constant 0 : index
    %c0_6 = arith.constant 0 : index
    %7 = vector.load %arg4[%c0_5, %c0_6] : memref<16x96xbf16, #tpu.memory_space<vmem>>, vector<16x96xbf16>
    tpu.vector_store %arg4[%c0_5, %c0_6], %6 {strides = array<i32>} : memref<16x96xbf16, #tpu.memory_space<vmem>>, vector<16x96xbf16>,
    return
  }
  func.func @transform_0(%arg0: i32) -> (i32, i32) {
    %c0_i32 = arith.constant 0 : i32
    %c0_i32_0 = arith.constant 0 : i32
    return %arg0, %c0_i32 : i32, i32
  }
  func.func @transform_1(%arg0: i32) -> (i32, i32) {
    %c0_i32 = arith.constant 0 : i32
    %c0_i32_0 = arith.constant 0 : i32
    %c0_i32_1 = arith.constant 0 : i32
    return %c0_i32, %c0_i32_0 : i32, i32
  }
  func.func @transform_2(%arg0: i32) -> (i32, i32) {
    %c0_i32 = arith.constant 0 : i32
    %c0_i32_0 = arith.constant 0 : i32
    %c0_i32_1 = arith.constant 0 : i32
    return %c0_i32, %c0_i32_0 : i32, i32
  }
  func.func @transform_3(%arg0: i32) -> (i32, i32) {
    %c0_i32 = arith.constant 0 : i32
    %c0_i32_0 = arith.constant 0 : i32
    return %arg0, %c0_i32 : i32, i32
  }
}

</mosaic_0001>

<llo_original>
// kernel: tpu_custom_call.1
$region0: #{tpu_custom_call.1}
  #allocation0 [shape = 'u32[]', space=smem, size = 0x4, offset = 0x4, fixed_abs, tag = 'smem constant byte address 0x4 - core index']
  #allocation1 [shape = 'u32[144,128]{1,0:T(1,128)}', space=vmem, size = 0x12000, scoped, tag = 'internal scratch']
  %s0 = inlined_call_operand.hbm [shape: bf16[16,32], index: 0, kind: input, shape index: {}]
  %s1 = inlined_call_operand.hbm [shape: bf16[32,96], index: 1, kind: input, shape index: {}]
  %s2 = inlined_call_operand.vmem [shape: f32[1,96], index: 2, kind: input, shape index: {}]
  %s3 = inlined_call_operand.hbm [shape: bf16[16,96], index: 3, kind: output, shape index: {}]
  %s4 = sld [smem:[#allocation0]]
  $region30: #{tpu_custom_call.1} parent=0
    _
  %s6 = ssub.s32 1, %s4
  %s7 = scalar_select 0, %s6, %s4
  $region1: #{tpu_custom_call.1} parent=0
    #allocation2 [shape = 'u8[4096]{0}', space=vmem, size = 0x1000, scoped, tag = 'input window, operand 0, single buffered']
    #allocation3 [shape = 's32[1]{0}', space=sflag, size = 0x4, scoped, tag = 'scoped memory for tpu_custom_call.1']
    #allocation4 [shape = 's32[1]{0}', space=sflag, size = 0x4, scoped, tag = 'scoped memory for tpu_custom_call.1']
    #allocation5 [shape = 'u8[8192]{0}', space=vmem, size = 0x2000, scoped, tag = 'input window, operand 1, single buffered']
    #allocation6 [shape = 's32[1]{0}', space=sflag, size = 0x4, scoped, tag = 'scoped memory for tpu_custom_call.1']
    #allocation7 [shape = 'u8[4096]{0}', space=vmem, size = 0x1000, scoped, tag = 'output window, operand 0, single buffered']
    %8 = vsyncpa [#allocation3], 0
    %9 = vsyncpa [#allocation6], 0
    %10 = vsyncpa [#allocation4], 0
    // Predicated region
    $region2: #{tpu_custom_call.1} parent=1 // pred_check
      _
    $region3: #{tpu_custom_call.1} parent=1 // pred_check_branch
      %12 = sbr.rel (0) target = $region5
    $region4: #{tpu_custom_call.1} parent=1 // pred_region
      %s14 = ssub.s32 128, 128
      %15 = vsyncadd [#allocation3], %s14
      %s16 = sshll.u32 [#allocation2], 4
      %s17 = int_to_ptr.vmem [resolvable:$true] %s16
      %22 = dma.hbm_to_vmem [thread:$0]  %s0, 128, %s17, [#allocation3], 64, 64, 4
    $region5: #{tpu_custom_call.1} parent=1 // pred_fallthru
      _
    // Predicated region
    $region6: #{tpu_custom_call.1} parent=1 // pred_check
      _
    $region7: #{tpu_custom_call.1} parent=1 // pred_check_branch
      %24 = sbr.rel (0) target = $region9
    $region8: #{tpu_custom_call.1} parent=1 // pred_region
      %s26 = ssub.s32 256, 256
      %27 = vsyncadd [#allocation6], %s26
      %s28 = sshll.u32 [#allocation5], 4
      %s29 = int_to_ptr.vmem [resolvable:$true] %s28
      %34 = dma.hbm_to_vmem [thread:$0]  %s1, 256, %s29, [#allocation6], 64, 64, 4
    $region9: #{tpu_custom_call.1} parent=1 // pred_fallthru
      _
    // Predicated region
    $region10: #{tpu_custom_call.1} parent=1 // pred_check
      _
    $region11: #{tpu_custom_call.1} parent=1 // pred_check_branch
      %36 = sbr.rel (0) target = $region13
    $region12: #{tpu_custom_call.1} parent=1 // pred_region
      _
    $region13: #{tpu_custom_call.1} parent=1 // pred_fallthru
      _
    // Predicated region
    $region14: #{tpu_custom_call.1} parent=1 // pred_check
      _
    $region15: #{tpu_custom_call.1} parent=1 // pred_check_branch
      %38 = sbr.rel (0) target = $region17
    $region16: #{tpu_custom_call.1} parent=1 // pred_region
      %39 = dma.done [#allocation3], 128
    $region17: #{tpu_custom_call.1} parent=1 // pred_fallthru
      _
    // Predicated region
    $region18: #{tpu_custom_call.1} parent=1 // pred_check
      _
    $region19: #{tpu_custom_call.1} parent=1 // pred_check_branch
      %41 = sbr.rel (0) target = $region21
    $region20: #{tpu_custom_call.1} parent=1 // pred_region
      %42 = dma.done [#allocation6], 256
    $region21: #{tpu_custom_call.1} parent=1 // pred_fallthru
      _
    %v44 = vld [vmem:[#allocation2] sm:$0xf]
    %v45 = vld [vmem:[#allocation2 + $0x4] sm:$0xf]
    %v46 = vld [vmem:[#allocation5] sm:$0xf]
    %v47 = vld [vmem:[#allocation5 + $0x4] sm:$0xf]
    %v48 = vld [vmem:[#allocation5 + $0x8] sm:$0xf]
    %v49 = vld [vmem:[#allocation5 + $0xc] sm:$0xf]
    %v50 = vld [vmem:[%s2] sm:$0x1]
    %v52 = vlaneseq
    %v53 = vshrl.u32 %v52, 7
    %v54 = vsub.s32 0, %v53
    %v55 = vrot.slane %v50, %v54
    %v59 = vunpack.c.l.b16 %v44
    %v60 = vunpack.c.l.b16 %v45
    %v61 = vpack.c.b16 %v60, %v59
    %v66 = vunpack.c.l.b16 %v46
    %v67 = vunpack.c.l.b16 %v47
    %v68 = vunpack.c.l.b16 %v48
    %v69 = vunpack.c.l.b16 %v49
    %v70 = vpack.c.b16 %v67, %v66
    %v71 = vpack.c.b16 %v69, %v68
    %vm74 = vcmask 261120
    %v76 = vsel %vm74, %v61, 0
    %78 = vmatprep.subr.bf16.mxu0 0
    %79 = vmatpush1.bf16.msra.mxu0 %v70
    %80 = vmatprep.subr.bf16.mxu0 0
    %81 = vmatpush1.bf16.msra.mxu0 %v71
    %82 = vmatprep.subr.bf16.mxu0 0
    %83 = vmatpush1.bf16.msra.mxu0 0
    %84 = vmatprep.subr.bf16.mxu0 0
    %85 = vmatpush1.bf16.msra.mxu0 0
    %86 = vmatprep.subr.bf16.mxu0 0
    %87 = vmatpush1.bf16.msra.mxu0 0
    %88 = vmatprep.subr.bf16.mxu0 0
    %89 = vmatpush1.bf16.msra.mxu0 0
    %90 = vmatprep.subr.bf16.mxu0 0
    %91 = vmatpush1.bf16.msra.mxu0 0
    %92 = vmatprep.subr.bf16.mxu0 0
    %93 = vmatpush1.bf16.msra.mxu0 0
    %94 = vmatprep.subr.bf16.mxu0 0
    %95 = vmatpush1.bf16.msra.mxu0 0
    %96 = vmatprep.subr.bf16.mxu0 0
    %97 = vmatpush1.bf16.msra.mxu0 0
    %98 = vmatprep.subr.bf16.mxu0 0
    %99 = vmatpush1.bf16.msra.mxu0 0
    %100 = vmatprep.subr.bf16.mxu0 0
    %101 = vmatpush1.bf16.msra.mxu0 0
    %102 = vmatprep.subr.bf16.mxu0 0
    %103 = vmatpush1.bf16.msra.mxu0 0
    %104 = vmatprep.subr.bf16.mxu0 0
    %105 = vmatpush1.bf16.msra.mxu0 0
    %106 = vmatprep.subr.bf16.mxu0 0
    %107 = vmatpush1.bf16.msra.mxu0 0
    %108 = vmatprep.subr.bf16.mxu0 0
    %109 = vmatpush1.bf16.msra.mxu0 0
    %110 = vmatprep.mubr.bf16.mxu0 0
    %111 = vmatmul.mubr.bf16.gmra.mrb[0].mxu0 %v76
    %v112 = vpop.f32.mrb[0].mxu0
    %v113 = vadd.f32 %v55, %v112
    %v114 = vpop.f32.mrb[0].mxu0
    %v115 = vpop.f32.mrb[0].mxu0
    %v116 = vadd.f32 %v55, %v115
    %v117 = vpop.f32.mrb[0].mxu0
    %118 = vdwg.mxu0
    %v119 = vpack.c.bf16 %v116, %v113
    %v121 = vunpack.c.l.b16 %v119
    %v122 = vunpack.c.h.b16 %v119
    %v123 = vpack.c.b16 %v121, %v121
    %v124 = vpack.c.b16 %v122, %v122
    %vm127 = vcmask 781312
    %128 = vst.msk [vmem:[#allocation7] sm:$0xf] %vm127, %v123
    %129 = vst.msk [vmem:[#allocation7 + $0x4] sm:$0xf] %vm127, %v124
    // Predicated region
    $region22: #{tpu_custom_call.1} parent=1 // pred_check
      _
    $region23: #{tpu_custom_call.1} parent=1 // pred_check_branch
      %131 = sbr.rel (0) target = $region25
    $region24: #{tpu_custom_call.1} parent=1 // pred_region
      %s133 = ssub.s32 128, 128
      %134 = vsyncadd [#allocation4], %s133
      %s135 = sshll.u32 [#allocation7], 4
      %s136 = int_to_ptr.vmem [resolvable:$true] %s135
      %141 = dma.vmem_to_hbm [thread:$0]  %s136, 128, %s3, [#allocation4], 64, 64, 4
    $region25: #{tpu_custom_call.1} parent=1 // pred_fallthru
      _
    // Predicated region
    $region26: #{tpu_custom_call.1} parent=1 // pred_check
      _
    $region27: #{tpu_custom_call.1} parent=1 // pred_check_branch
      %143 = sbr.rel (0) target = $region29
    $region28: #{tpu_custom_call.1} parent=1 // pred_region
      %144 = dma.done [#allocation4], 128
    $region29: #{tpu_custom_call.1} parent=1 // pred_fallthru
      _
    %145 = vsyncpa [#allocation3], 1
    %146 = vsyncpa [#allocation6], 1
    %147 = vsyncpa [#allocation4], 1

</llo_original>
